<compile_context>
chip_gen: v7x
topology: tpu7x:2x2x1
jax: 0.10.0
libtpu: 0.0.40
codegen_flags: <defaults>
</compile_context>

<pallas_src>
import functools

import jax
import jax.numpy as jnp
from jax import lax
from jax.experimental import pallas as pl
from jax.experimental.pallas import tpu as pltpu


def _round_up(x, m):
    return ((x + m - 1) // m) * m


def _vmem_capacity_bytes():
    try:
        return int(pltpu.get_tpu_info().vmem_capacity_bytes)
    except Exception:
        return 128 * 1024 * 1024


def _choose_tile_n(n, c, itemsize):
    """Rows per tile + scoped-VMEM limit, generation-aware."""
    cap = _vmem_capacity_bytes()
    if cap <= 64 * 1024 * 1024:            # v7x: 64 MiB physical VMEM
        per_buffer = 4 * 1024 * 1024
        vmem_limit = 56 * 1024 * 1024
    else:                                   # v5e / v6e: 128 MiB physical VMEM
        per_buffer = 8 * 1024 * 1024
        vmem_limit = 100 * 1024 * 1024

    row_bytes = max(int(itemsize) * c, 1)
    # Rows from the per-pipelined-buffer DMA budget (input dtype bytes).
    t = per_buffer // row_bytes
    # Bound by total VMEM: 2x double-buffered input + ~4x f32-sized intermediates.
    t_vmem = (vmem_limit - 8 * 1024 * 1024) // max(c * (2 * int(itemsize) + 16), 1)
    t = min(t, t_vmem)
    t = max(8, (t // 8) * 8)
    # Keep >= ~8 grid steps so both v7x TensorCores get work and the pipeline stays fed.
    t = min(t, _round_up(pl.cdiv(n, 8), 8))
    t = max(8, min(t, _round_up(n, 8)))
    return t, vmem_limit


def _focal_loss_kernel(n_ref, logits_ref, targets_ref, out_ref, *,
                       alpha, gamma, reduction):
    i = pl.program_id(0)
    logits = logits_ref[...].astype(jnp.float32)               # (TILE_N, C)
    tn, c = logits.shape

    # Lane-dense targets -> (TILE_N, 1) column (XLU transpose; that slot has slack).
    tgt_col = jnp.transpose(targets_ref[0, :, :], (1, 0))      # (TILE_N, 1) int32

    # Numerically-stable log-sum-exp over the class (lane) axis.
    m = jnp.max(logits, axis=-1, keepdims=True)                 # (TILE_N, 1)
    exp_shift = jnp.exp(logits - m)                             # (TILE_N, C)
    sum_exp = jnp.sum(exp_shift, axis=-1, keepdims=True)        # (TILE_N, 1)
    lse = m + jnp.log(sum_exp)

    # Gather the target logit via a one-hot select built from a small (1, C) iota.
    col = lax.broadcasted_iota(jnp.int32, (1, c), 1)            # (1, C)
    onehot = col == tgt_col                                     # broadcast -> (TILE_N, C)
    tgt_logit = jnp.sum(jnp.where(onehot, logits, 0.0),
                        axis=-1, keepdims=True)                 # (TILE_N, 1)

    ce = lse - tgt_logit                                        # cross_entropy(..., 'none')
    p_t = jnp.exp(-ce)
    one_minus = 1.0 - p_t
    g = float(gamma)
    if g == 2.0:                      # default: one VPU multiply, no pow edge case
        focal = one_minus * one_minus
    elif g == 1.0:
        focal = one_minus
    elif g == 0.0:
        focal = jnp.ones_like(one_minus)
    elif g == float(int(g)) and 0.0 < g <= 8.0:
        focal = one_minus
        for _ in range(int(g) - 1):
            focal = focal * one_minus
    else:
        # Clamp: fp rounding can make p_t slightly > 1, and a fractional power of a
        # negative number would be NaN.
        focal = jnp.maximum(one_minus, 0.0) ** g
    loss = alpha * focal * ce                                   # (TILE_N, 1)

    # Mask rows beyond the true batch size (the ragged last logits block reads
    # garbage rows).  This MUST happen before any reduction / store.
    row = lax.broadcasted_iota(jnp.int32, (tn, 1), 0)
    valid = (i * tn + row) < n_ref[0]
    loss = jnp.where(valid, loss, 0.0)

    if reduction == "none":
        out_ref[0, :, :] = jnp.transpose(loss, (1, 0))          # lane-dense (1, TILE_N)
    else:
        partial = jnp.sum(loss)                                 # per-tile partial sum
        out_ref[...] = jnp.full(out_ref.shape, partial, jnp.float32)


def focal_loss(logits, targets, *, alpha=0.25, gamma=2.0, reduction="mean"):
    """Pallas TPU implementation of FocalLoss.forward.

    logits:  (N, C) float array (any float dtype; computed in f32 in-kernel).
    targets: (N,)   integer class indices.  Out-of-range targets yield ce = lse
             (all-zero one-hot) rather than an error, unlike PyTorch.
    """
    n, c = logits.shape
    tile_n, vmem_limit = _choose_tile_n(n, c, jnp.dtype(logits.dtype).itemsize)
    num_tiles = pl.cdiv(n, tile_n)
    n_pad = num_tiles * tile_n

    # Only the tiny targets array is padded; the full logits array stays unpadded
    # in HBM (no extra full read+write by XLA).
    tgt = targets.astype(jnp.int32)
    if n_pad != n:
        tgt = jnp.pad(tgt, (0, n_pad - n))
    targets3d = tgt.reshape(num_tiles, 1, tile_n)

    n_scalar = jnp.array([n], dtype=jnp.int32)                  # scalar-prefetch (SMEM)

    if reduction == "none":
        out_shape = jax.ShapeDtypeStruct((num_tiles, 1, tile_n), jnp.float32)
        out_spec = pl.BlockSpec((1, 1, tile_n), lambda i, n_ref: (i, 0, 0))
    else:
        out_shape = jax.ShapeDtypeStruct((num_tiles, 1, 128), jnp.float32)
        out_spec = pl.BlockSpec((1, 1, 128), lambda i, n_ref: (i, 0, 0))

    kernel = functools.partial(
        _focal_loss_kernel, alpha=float(alpha), gamma=float(gamma),
        reduction=reduction)

    out = pl.pallas_call(
        kernel,
        out_shape=out_shape,
        grid_spec=pltpu.PrefetchScalarGridSpec(
            num_scalar_prefetch=1,
            grid=(num_tiles,),
            in_specs=[
                pl.BlockSpec((tile_n, c), lambda i, n_ref: (i, 0)),        # logits tile
                pl.BlockSpec((1, 1, tile_n), lambda i, n_ref: (i, 0, 0)),  # targets
            ],
            out_specs=out_spec,
        ),
        compiler_params=pltpu.CompilerParams(
            dimension_semantics=("parallel",),     # shards tiles across v7x's 2 TCs
            vmem_limit_bytes=vmem_limit,           # generation-aware scoped-VMEM limit
        ),
    )(n_scalar, logits, targets3d)

    if reduction == "none":
        return out.reshape(n_pad)[:n]
    total = jnp.sum(out[:, 0, 0])
    if reduction == "mean":
        return total / n            # divide by the true batch size, not the padded one
    return total


def _focal_loss_ref(logits, targets, alpha=0.25, gamma=2.0, reduction="mean"):
    """Pure-JAX reference mirroring the PyTorch module."""
    logits = logits.astype(jnp.float32)
    lse = jax.scipy.special.logsumexp(logits, axis=-1)
    tgt_logit = jnp.take_along_axis(
        logits, targets[:, None].astype(jnp.int32), axis=-1)[:, 0]
    ce = lse - tgt_logit
    p_t = jnp.exp(-ce)
    loss = alpha * ((1.0 - p_t) ** gamma) * ce
    if reduction == "mean":
        return loss.mean()
    if reduction == "sum":
        return loss.sum()
    return loss


if __name__ == "__main__":
    key = jax.random.PRNGKey(0)
    k_logits, k_targets, k_logits2, k_targets2, k_logits3, k_targets3 = \
        jax.random.split(key, 6)

    # Small deterministic example: batch=8 samples, 32 classes.
    N, C = 8, 32
    logits = jax.random.normal(k_logits, (N, C), dtype=jnp.float32)
    targets = jax.random.randint(k_targets, (N,), 0, C, dtype=jnp.int32)

    out_mean = jax.block_until_ready(focal_loss(logits, targets, reduction="mean"))
    out_sum = jax.block_until_ready(focal_loss(logits, targets, reduction="sum"))
    out_none = jax.block_until_ready(focal_loss(logits, targets, reduction="none"))

    assert jnp.allclose(out_mean, _focal_loss_ref(logits, targets, reduction="mean"),
                        atol=1e-5, rtol=1e-5)
    assert jnp.allclose(out_sum, _focal_loss_ref(logits, targets, reduction="sum"),
                        atol=1e-5, rtol=1e-5)
    assert jnp.allclose(out_none, _focal_loss_ref(logits, targets, reduction="none"),
                        atol=1e-5, rtol=1e-5)

    # Ragged batch (N not a multiple of 8) exercises the partial-block + masking path.
    N2, C2 = 13, 32
    logits2 = jax.random.normal(k_logits2, (N2, C2), dtype=jnp.float32)
    targets2 = jax.random.randint(k_targets2, (N2,), 0, C2, dtype=jnp.int32)
    out2 = jax.block_until_ready(focal_loss(logits2, targets2, reduction="mean"))
    assert jnp.allclose(out2, _focal_loss_ref(logits2, targets2, reduction="mean"),
                        atol=1e-5, rtol=1e-5)

    # Multi-tile case with a ragged last tile (exercises the unpadded-logits path).
    N3, C3 = 300, 32
    logits3 = jax.random.normal(k_logits3, (N3, C3), dtype=jnp.float32)
    targets3 = jax.random.randint(k_targets3, (N3,), 0, C3, dtype=jnp.int32)
    out3_mean = jax.block_until_ready(focal_loss(logits3, targets3, reduction="mean"))
    out3_none = jax.block_until_ready(focal_loss(logits3, targets3, reduction="none"))
    assert jnp.allclose(out3_mean, _focal_loss_ref(logits3, targets3, reduction="mean"),
                        atol=1e-5, rtol=1e-5)
    assert jnp.allclose(out3_none, _focal_loss_ref(logits3, targets3, reduction="none"),
                        atol=1e-5, rtol=1e-5)

    print("KERNEL_OK")
</pallas_src>

<mosaic_0001>
module attributes {stable_mosaic.version = 11 : i64} {
  func.func @_focal_loss_kernel(%arg0: i32, %arg1: memref<1xi32, #tpu.memory_space<smem>>, %arg2: memref<8x32xf32, #tpu.memory_space<vmem>>, %arg3: memref<1x1x8xi32, #tpu.memory_space<vmem>>, %arg4: memref<1x1x128xf32, #tpu.memory_space<vmem>>) attributes {dimension_semantics = [#tpu.dimension_semantics<parallel>], iteration_bounds = array<i64: 1>, scalar_prefetch = 1 : i64, scratch_operands = 0 : i64, tpu.core_type = #tpu.core_type<tc>, window_params = [{transform_indices = @transform_0, window_bounds = array<i64: 8, 32>}, {transform_indices = @transform_1, window_bounds = array<i64: 1, 1, 8>}, {transform_indices = @transform_2, window_bounds = array<i64: 1, 1, 128>}]} {
    %c0 = arith.constant 0 : index
    %c0_0 = arith.constant 0 : index
    %0 = vector.load %arg2[%c0, %c0_0] : memref<8x32xf32, #tpu.memory_space<vmem>>, vector<8x32xf32>
    %c0_1 = arith.constant 0 : index
    %c0_2 = arith.constant 0 : index
    %c0_3 = arith.constant 0 : index
    %1 = vector.load %arg3[%c0_1, %c0_2, %c0_3] : memref<1x1x8xi32, #tpu.memory_space<vmem>>, vector<1x1x8xi32>
    %2 = vector.shape_cast %1 : vector<1x1x8xi32> to vector<1x8xi32>
    %3 = tpu.transpose %2, [1, 0] : vector<1x8xi32> -> vector<8x1xi32>
    %cst = arith.constant dense<0xFF800000> : vector<8xf32>
    %4 = vector.multi_reduction <maximumf>, %0, %cst [1] : vector<8x32xf32> to vector<8xf32>
    %5 = vector.shape_cast %4 : vector<8xf32> to vector<8x1xf32>
    %6 = vector.broadcast %5 : vector<8x1xf32> to vector<8x32xf32>
    %7 = arith.subf %0, %6 : vector<8x32xf32>
    %8 = math.exp %7 : vector<8x32xf32>
    %cst_4 = arith.constant dense<0.000000e+00> : vector<8xf32>
    %9 = vector.multi_reduction <add>, %8, %cst_4 [1] : vector<8x32xf32> to vector<8xf32>
    %10 = vector.shape_cast %9 : vector<8xf32> to vector<8x1xf32>
    %11 = math.log %10 : vector<8x1xf32>
    %12 = arith.addf %5, %11 : vector<8x1xf32>
    %13 = tpu.iota {dimensions = array<i32: 1>} : vector<1x32xi32>
    %14 = vector.broadcast %13 : vector<1x32xi32> to vector<8x32xi32>
    %15 = vector.broadcast %3 : vector<8x1xi32> to vector<8x32xi32>
    %16 = arith.cmpi eq, %14, %15 : vector<8x32xi32>
    %cst_5 = arith.constant 0.000000e+00 : f32
    %17 = vector.broadcast %cst_5 : f32 to vector<8x32xf32>
    %18 = arith.select %16, %0, %17 : vector<8x32xi1>, vector<8x32xf32>
    %cst_6 = arith.constant dense<0.000000e+00> : vector<8xf32>
    %19 = vector.multi_reduction <add>, %18, %cst_6 [1] : vector<8x32xf32> to vector<8xf32>
    %20 = vector.shape_cast %19 : vector<8xf32> to vector<8x1xf32>
    %21 = arith.subf %12, %20 : vector<8x1xf32>
    %cst_7 = arith.constant 0.000000e+00 : f32
    %22 = vector.broadcast %cst_7 : f32 to vector<8x1xf32>
    %23 = arith.subf %22, %21 : vector<8x1xf32>
    %24 = math.exp %23 : vector<8x1xf32>
    %cst_8 = arith.constant 1.000000e+00 : f32
    %25 = vector.broadcast %cst_8 : f32 to vector<8x1xf32>
    %26 = arith.subf %25, %24 : vector<8x1xf32>
    %27 = arith.mulf %26, %26 : vector<8x1xf32>
    %cst_9 = arith.constant 2.500000e-01 : f32
    %28 = vector.broadcast %cst_9 : f32 to vector<8x1xf32>
    %29 = arith.mulf %28, %27 : vector<8x1xf32>
    %30 = arith.mulf %29, %21 : vector<8x1xf32>
    %31 = tpu.iota {dimensions = array<i32: 0>} : vector<8x1xi32>
    %c8_i32 = arith.constant 8 : i32
    %32 = arith.muli %arg0, %c8_i32 : i32
    %33 = vector.broadcast %32 : i32 to vector<8x1xi32>
    %34 = arith.addi %33, %31 : vector<8x1xi32>
    %c0_10 = arith.constant 0 : index
    %35 = memref.load %arg1[%c0_10] : memref<1xi32, #tpu.memory_space<smem>>
    %36 = vector.broadcast %35 : i32 to vector<8x1xi32>
    %37 = arith.cmpi slt, %34, %36 : vector<8x1xi32>
    %cst_11 = arith.constant 0.000000e+00 : f32
    %38 = vector.broadcast %cst_11 : f32 to vector<8x1xf32>
    %39 = arith.select %37, %30, %38 : vector<8x1xi1>, vector<8x1xf32>
    %40 = vector.shape_cast %39 : vector<8x1xf32> to vector<1x8x1xf32>
    %cst_12 = arith.constant dense<0.000000e+00> : vector<1xf32>
    %41 = vector.multi_reduction <add>, %40, %cst_12 [1, 2] : vector<1x8x1xf32> to vector<1xf32>
    %42 = vector.shape_cast %41 : vector<1xf32> to vector<1x1x1xf32>
    %43 = vector.extract %42[0, 0, 0] : f32 from vector<1x1x1xf32>
    %44 = vector.broadcast %43 : f32 to vector<1x1x128xf32>
    %c0_13 = arith.constant 0 : index
    %c0_14 = arith.constant 0 : index
    %c0_15 = arith.constant 0 : index
    %45 = vector.load %arg4[%c0_13, %c0_14, %c0_15] : memref<1x1x128xf32, #tpu.memory_space<vmem>>, vector<1x1x128xf32>
    tpu.vector_store %arg4[%c0_13, %c0_14, %c0_15], %44 {strides = array<i32>} : memref<1x1x128xf32, #tpu.memory_space<vmem>>, vector<1x1x128xf32>,
    return
  }
  func.func @transform_0(%arg0: i32, %arg1: memref<1xi32, #tpu.memory_space<smem>>) -> (i32, i32) {
    %c0_i32 = arith.constant 0 : i32
    %c0_i32_0 = arith.constant 0 : i32
    return %arg0, %c0_i32 : i32, i32
  }
  func.func @transform_1(%arg0: i32, %arg1: memref<1xi32, #tpu.memory_space<smem>>) -> (i32, i32, i32) {
    %c0_i32 = arith.constant 0 : i32
    %c0_i32_0 = arith.constant 0 : i32
    %c0_i32_1 = arith.constant 0 : i32
    return %arg0, %c0_i32, %c0_i32_0 : i32, i32, i32
  }
  func.func @transform_2(%arg0: i32, %arg1: memref<1xi32, #tpu.memory_space<smem>>) -> (i32, i32, i32) {
    %c0_i32 = arith.constant 0 : i32
    %c0_i32_0 = arith.constant 0 : i32
    %c0_i32_1 = arith.constant 0 : i32
    return %arg0, %c0_i32, %c0_i32_0 : i32, i32, i32
  }
}

</mosaic_0001>

<llo_original>
// kernel: tpu_custom_call.1
$region0: #{tpu_custom_call.1}
  #allocation0 [shape = 'u32[]', space=smem, size = 0x4, offset = 0x4, fixed_abs, tag = 'smem constant byte address 0x4 - core index']
  #allocation1 [shape = 'u32[144,128]{1,0:T(1,128)}', space=vmem, size = 0x12000, scoped, tag = 'internal scratch']
  #allocation2 [shape = 's32[1]{0}', space=sflag, size = 0x4, scoped, tag = 'scoped memory for tpu_custom_call.1']
  #allocation3 [shape = 's32[1]{0:T(128)S(6)}', space=smem, size = 0x200, scoped, tag = 'prefetched SMEM operand 0']
  %s0 = inlined_call_operand.<no memory space> [shape: s32[1], index: 0, kind: input, shape index: {}]
  %s1 = inlined_call_operand.hbm [shape: f32[8,32], index: 1, kind: input, shape index: {}]
  %s2 = inlined_call_operand.hbm [shape: s32[1,1,8], index: 2, kind: input, shape index: {}]
  %s3 = inlined_call_operand.hbm [shape: f32[1,1,128], index: 3, kind: output, shape index: {}]
  %s4 = sld [smem:[#allocation0]]
  $region26: #{tpu_custom_call.1} parent=0
    _
  %s6 = ssub.s32 1, %s4
  %s7 = scalar_select 0, %s6, %s4
  %8 = sst [smem:[#allocation3]] %s0
  $region1: #{tpu_custom_call.1} parent=0
    #allocation4 [shape = 'u8[4096]{0}', space=vmem, size = 0x1000, scoped, tag = 'input window, operand 1, single buffered']
    #allocation5 [shape = 's32[1]{0}', space=sflag, size = 0x4, scoped, tag = 'scoped memory for tpu_custom_call.1']
    #allocation6 [shape = 's32[1]{0}', space=sflag, size = 0x4, scoped, tag = 'scoped memory for tpu_custom_call.1']
    #allocation7 [shape = 'u8[512]{0}', space=vmem, size = 0x400, scoped, tag = 'input window, operand 2, single buffered']
    #allocation8 [shape = 's32[1]{0}', space=sflag, size = 0x4, scoped, tag = 'scoped memory for tpu_custom_call.1']
    #allocation9 [shape = 'u8[512]{0}', space=vmem, size = 0x400, scoped, tag = 'output window, operand 0, single buffered']
    %9 = vsyncpa [#allocation5], 0
    %10 = vsyncpa [#allocation8], 0
    %11 = vsyncpa [#allocation6], 0
    // Predicated region
    $region2: #{tpu_custom_call.1} parent=1 // pred_check
      _
    $region3: #{tpu_custom_call.1} parent=1 // pred_check_branch
      %13 = sbr.rel (0) target = $region5
    $region4: #{tpu_custom_call.1} parent=1 // pred_region
      %s15 = ssub.s32 128, 128
      %16 = vsyncadd [#allocation5], %s15
      %s18 = sshll.u32 [#allocation4], 4
      %s19 = int_to_ptr.vmem [resolvable:$true] %s18
      %21 = dma.hbm_to_vmem [thread:$0]  %s1, 128, %s19, [#allocation5]
    $region5: #{tpu_custom_call.1} parent=1 // pred_fallthru
      _
    // Predicated region
    $region6: #{tpu_custom_call.1} parent=1 // pred_check
      _
    $region7: #{tpu_custom_call.1} parent=1 // pred_check_branch
      %23 = sbr.rel (0) target = $region9
    $region8: #{tpu_custom_call.1} parent=1 // pred_region
      %s25 = ssub.s32 16, 16
      %26 = vsyncadd [#allocation8], %s25
      %s28 = sshll.u32 [#allocation7], 4
      %s29 = int_to_ptr.vmem [resolvable:$true] %s28
      %31 = dma.hbm_to_vmem [thread:$0]  %s2, 16, %s29, [#allocation8]
    $region9: #{tpu_custom_call.1} parent=1 // pred_fallthru
      _
    // Predicated region
    $region10: #{tpu_custom_call.1} parent=1 // pred_check
      _
    $region11: #{tpu_custom_call.1} parent=1 // pred_check_branch
      %33 = sbr.rel (0) target = $region13
    $region12: #{tpu_custom_call.1} parent=1 // pred_region
      %34 = dma.done [#allocation5], 128
    $region13: #{tpu_custom_call.1} parent=1 // pred_fallthru
      _
    // Predicated region
    $region14: #{tpu_custom_call.1} parent=1 // pred_check
      _
    $region15: #{tpu_custom_call.1} parent=1 // pred_check_branch
      %36 = sbr.rel (0) target = $region17
    $region16: #{tpu_custom_call.1} parent=1 // pred_region
      %37 = dma.done [#allocation8], 16
    $region17: #{tpu_custom_call.1} parent=1 // pred_fallthru
      _
    %v38 = vld [vmem:[#allocation4] sm:$0xff]
    %v39 = vld [vmem:[#allocation7] sm:$0x1]
    %40 = vxpose.xlu0.b32.start [1/16] %v39, 128
    %41 = vxpose.xlu0.b32.cont [2/16] 0, 128
    %42 = vxpose.xlu0.b32.cont [3/16] 0, 128
    %43 = vxpose.xlu0.b32.cont [4/16] 0, 128
    %44 = vxpose.xlu0.b32.cont [5/16] 0, 128
    %45 = vxpose.xlu0.b32.cont [6/16] 0, 128
    %46 = vxpose.xlu0.b32.cont [7/16] 0, 128
    %47 = vxpose.xlu0.b32.cont [8/16] 0, 128
    %48 = vxpose.xlu0.b32.cont [9/16] 0, 128
    %49 = vxpose.xlu0.b32.cont [10/16] 0, 128
    %50 = vxpose.xlu0.b32.cont [11/16] 0, 128
    %51 = vxpose.xlu0.b32.cont [12/16] 0, 128
    %52 = vxpose.xlu0.b32.cont [13/16] 0, 128
    %53 = vxpose.xlu0.b32.cont [14/16] 0, 128
    %54 = vxpose.xlu0.b32.cont [15/16] 0, 128
    %55 = vxpose.xlu0.b32.end [16/16] 0, 128
    %v56 = vpop.trf.xlu0
    %v57 = vpop.trf.xlu0
    %v58 = vpop.trf.xlu0
    %v59 = vpop.trf.xlu0
    %v60 = vpop.trf.xlu0
    %v61 = vpop.trf.xlu0
    %v62 = vpop.trf.xlu0
    %v63 = vpop.trf.xlu0
    %v64 = vpop.trf.xlu0
    %v65 = vpop.trf.xlu0
    %v66 = vpop.trf.xlu0
    %v67 = vpop.trf.xlu0
    %v68 = vpop.trf.xlu0
    %v69 = vpop.trf.xlu0
    %v70 = vpop.trf.xlu0
    %v71 = vpop.trf.xlu0
    %vm72 = vcmask 261120
    %v73 = vsel %vm72, %v38, -inf
    %74 = vmax.xlane.f32.xlu0 %v73
    %v75 = vpop.xlane.xlu0 %74
    %v76 = vsub.f32 %v38, %v75
    %v77 = vmul.f32 %v76, 1.442695
    %v78 = vpow.pop %v77
    %v79 = vsel %vm72, %v78, 0.0
    %80 = vadd.xlane.f32.xlu0 %v79
    %v81 = vpop.xlane.xlu0 %80
    %v82 = vlog2.pop %v81
    %v83 = vmul.f32 %v82, 0.6931472
    %v84 = vadd.f32 %v75, %v83
    %v85 = vlaneseq
    %v86 = vand.u32 %v85, 127
    %87 = vset.pattern.permute.xlu0 0
    %88 = vperm.xlu0 %87, %v56
    %v89 = vpop.permute.xlu0 %88
    %vm90 = vcmp.eq.s32.totalorder %v86, %v89
    %v91 = vsel %vm90, %v38, 0.0
    %v92 = vsel %vm72, %v91, 0.0
    %93 = vadd.xlane.f32.xlu0 %v92
    %v94 = vpop.xlane.xlu0 %93
    %v95 = vsub.f32 %v84, %v94
    %v96 = vsub.f32 0.0, %v95
    %v97 = vmul.f32 %v96, 1.442695
    %v98 = vpow.pop %v97
    %v99 = vsub.f32 1.0, %v98
    %v100 = vmul.f32 %v99, %v99
    %v101 = vmul.f32 %v100, 0.25
    %v102 = vmul.f32 %v101, %v95
    %v103 = vlaneseq
    %v104 = vshrl.u32 %v103, 7
    %s105 = smul.u32 0, 8
    %v106 = vstv %s105
    %v107 = vadd.s32 %v106, %v104
    %s108 = sld [smem:[#allocation3]]
    %v109 = vstv %s108
    %vm110 = vcmp.lt.s32.totalorder %v107, %v109
    %v111 = vsel %vm110, %v102, 0.0
    %vm112 = vcmask 7168
    %v113 = vsel %vm112, %v111, 0.0
    %114 = vadd.xlane.f32.xlu0 %v113
    %v115 = vpop.xlane.xlu0 %114
    %v116 = vrot.slane %v115, 4
    %v117 = vadd.f32 %v115, %v116
    %v118 = vrot.slane %v117, 2
    %v119 = vadd.f32 %v117, %v118
    %v120 = vrot.slane %v119, 1
    %v121 = vadd.f32 %v119, %v120
    %s122 = vtos %v121
    %v123 = vstv %s122
    %124 = vst [vmem:[#allocation9] sm:$0x1] %v123
    // Predicated region
    $region18: #{tpu_custom_call.1} parent=1 // pred_check
      _
    $region19: #{tpu_custom_call.1} parent=1 // pred_check_branch
      %126 = sbr.rel (0) target = $region21
    $region20: #{tpu_custom_call.1} parent=1 // pred_region
      %s128 = ssub.s32 16, 16
      %129 = vsyncadd [#allocation6], %s128
      %s131 = sshll.u32 [#allocation9], 4
      %s132 = int_to_ptr.vmem [resolvable:$true] %s131
      %134 = dma.vmem_to_hbm [thread:$0]  %s132, 16, %s3, [#allocation6]
    $region21: #{tpu_custom_call.1} parent=1 // pred_fallthru
      _
    // Predicated region
    $region22: #{tpu_custom_call.1} parent=1 // pred_check
      _
    $region23: #{tpu_custom_call.1} parent=1 // pred_check_branch
      %136 = sbr.rel (0) target = $region25
    $region24: #{tpu_custom_call.1} parent=1 // pred_region
      %137 = dma.done [#allocation6], 16
    $region25: #{tpu_custom_call.1} parent=1 // pred_fallthru
      _
    %138 = vsyncpa [#allocation5], 1
    %139 = vsyncpa [#allocation8], 1
    %140 = vsyncpa [#allocation6], 1

</llo_original>
